<compile_context>
chip_gen: v7x
topology: tpu7x:2x2x1
jax: 0.10.0
libtpu: 0.0.40
codegen_flags: <defaults>
</compile_context>

<pallas_src>
import functools

import jax
import jax.numpy as jnp
from jax.experimental import pallas as pl
from jax.experimental.pallas import tpu as pltpu

_LANE = 128
_NEG = -1e30  # finite "minus infinity": keeps 0 * NEG == 0 (no NaNs)


def _rup(n, m=_LANE):
    return ((n + m - 1) // m) * m


def _leaky_relu(x, slope=0.01):
    # valid for slope < 1; single VPU max instead of compare+select
    return jnp.maximum(x, slope * x)


def discrete_policy_kernel(x_ref, w1_ref, b1_ref, w2_ref, b2_ref, w3_ref, b3_ref,
                           g_ref, out_ref, *, num_actions):
    B, P = g_ref.shape          # P = padded (128-aligned) action lanes
    A = num_actions             # real number of actions (static)

    x = x_ref[...]

    # ---- MLP hot path (MXU matmuls, f32 accum) ----
    h1 = _leaky_relu(
        jnp.dot(x, w1_ref[...], preferred_element_type=jnp.float32) + b1_ref[...])
    h2 = _leaky_relu(
        jnp.dot(h1, w2_ref[...], preferred_element_type=jnp.float32) + b2_ref[...])
    logits = jnp.dot(h2, w3_ref[...], preferred_element_type=jnp.float32) + b3_ref[...]
    # padded lanes of `logits` are exactly 0 (zero-padded W3 cols / b3).

    lane = jax.lax.broadcasted_iota(jnp.int32, (B, P), 1)
    valid = lane < A
    masked = jnp.where(valid, logits, jnp.float32(_NEG))

    # ---- softmax / log_softmax over the action lanes ----
    m = jnp.max(masked, axis=-1, keepdims=True)
    e = jnp.exp(masked - m)                      # padded lanes underflow to 0
    s = jnp.sum(e, axis=-1, keepdims=True)
    inv_s = jnp.float32(1.0) / s                 # exact divide (8 rows; negligible)
    probs = e * inv_s                            # padded lanes stay exactly 0
    log_probs = (masked - m) - jnp.log(s)        # padded lanes ~ -1e30 (finite)

    # ---- categorical sample via Gumbel-max (== torch.multinomial) ----
    z = log_probs + g_ref[...]
    zmax = jnp.max(z, axis=-1, keepdims=True)
    is_max = z >= zmax
    int_act = jnp.min(jnp.where(is_max, lane, P), axis=-1, keepdims=True)  # (B,1)
    act = (lane == int_act).astype(jnp.float32)                            # one-hot

    # ---- per-row & global stats ----
    # log_probs.gather(1, int_act): one-hot dot; padded lanes contribute 0*(-1e30)=0
    log_pi = jnp.sum(act * log_probs, axis=-1, keepdims=True)              # (B,1)
    # (out ** 2).mean(): padded logits are exactly 0, so no masking needed
    reg = jnp.sum(jnp.sum(logits * logits, axis=-1, keepdims=True),
                  axis=0, keepdims=True) * (1.0 / (B * A))                 # (1,1)
    # -(log_probs * probs).sum(1).mean(): padded lanes give 0 * finite = 0
    ent = -jnp.sum(jnp.sum(probs * log_probs, axis=-1, keepdims=True),
                   axis=0, keepdims=True) * (1.0 / B)                      # (1,1)

    # misc block: lane 0 = log_pi, lane 1 = int_act, lane 2 = reg, lane 3 = ent
    misc = jnp.where(lane == 0, log_pi, 0.0)
    misc = jnp.where(lane == 1, int_act.astype(jnp.float32), misc)
    misc = jnp.where(lane == 2, reg, misc)
    misc = jnp.where(lane == 3, ent, misc)

    # ---- single lane-dense output slab: three unmasked 128-aligned stores ----
    out_ref[:, 0:P] = act
    out_ref[:, P:2 * P] = probs
    out_ref[:, 2 * P:3 * P] = misc


def prepare_params(params):
    """One-time prep (hoisted out of the forward path): transpose torch-layout
    (out,in) weights to (in,out) and zero-pad every feature dim to 128."""
    def prep(w, b):
        w = jnp.asarray(w, jnp.float32).T            # (in, out)
        fin, fout = w.shape
        rp, cp = _rup(fin), _rup(fout)
        wp = jnp.zeros((rp, cp), jnp.float32).at[:fin, :fout].set(w)
        bp = jnp.zeros((1, cp), jnp.float32).at[0, :fout].set(
            jnp.asarray(b, jnp.float32))
        return wp, bp

    w1, b1 = prep(params["w1"], params["b1"])
    w2, b2 = prep(params["w2"], params["b2"])
    w3, b3 = prep(params["w3"], params["b3"])
    return {"w1": w1, "b1": b1, "w2": w2, "b2": b2, "w3": w3, "b3": b3}


@functools.partial(jax.jit, static_argnames=("out_dim",))
def discrete_policy_forward(obs, prep, key, *, out_dim):
    """obs: (B, input_dim) f32. prep: prepare_params() output. key: PRNG key."""
    B, in_dim = obs.shape
    A = out_dim
    Ipad = prep["w1"].shape[0]
    Ppad = prep["w3"].shape[1]

    x = jnp.pad(obs.astype(jnp.float32), ((0, 0), (0, Ipad - in_dim)))
    gumbel = jax.random.gumbel(key, (B, Ppad), dtype=jnp.float32)

    vmem = pl.BlockSpec(memory_space=pltpu.MemorySpace.VMEM)
    slab = pl.pallas_call(
        functools.partial(discrete_policy_kernel, num_actions=A),
        out_shape=jax.ShapeDtypeStruct((B, 3 * Ppad), jnp.float32),
        in_specs=[vmem] * 8,
        out_specs=vmem,
    )(x, prep["w1"], prep["b1"], prep["w2"], prep["b2"], prep["w3"], prep["b3"],
      gumbel)

    act = slab[:, :A]
    probs = slab[:, Ppad:Ppad + A]
    misc = slab[:, 2 * Ppad:]
    log_pi = misc[:, 0:1]
    int_act = misc[:, 1:2].astype(jnp.int32)
    reg = misc[0, 2]
    ent = misc[0, 3]
    return act, int_act, probs, log_pi, reg, ent


def init_params(key, input_dim, out_dim, hidden_dim=32):
    """Torch-default-style init: U(-1/sqrt(fan_in), 1/sqrt(fan_in)), (out,in) layout."""
    ks = jax.random.split(key, 6)

    def lin(kw, kb, fan_in, fan_out):
        bound = 1.0 / jnp.sqrt(jnp.float32(fan_in))
        w = jax.random.uniform(kw, (fan_out, fan_in), jnp.float32, -bound, bound)
        b = jax.random.uniform(kb, (fan_out,), jnp.float32, -bound, bound)
        return w, b

    w1, b1 = lin(ks[0], ks[1], input_dim, hidden_dim)
    w2, b2 = lin(ks[2], ks[3], hidden_dim, hidden_dim)
    w3, b3 = lin(ks[4], ks[5], hidden_dim, out_dim)
    return {"w1": w1, "b1": b1, "w2": w2, "b2": b2, "w3": w3, "b3": b3}


def _reference(obs, params):
    """Pure-JAX reference (probs / reg / entropy only; sampling is RNG-stream
    dependent so it is not cross-checked)."""
    def lin(x, w, b):
        return jnp.dot(x, jnp.asarray(w).T,
                       precision=jax.lax.Precision.HIGHEST) + jnp.asarray(b)

    def lrelu(x):
        return jnp.where(x >= 0, x, 0.01 * x)

    h1 = lrelu(lin(obs, params["w1"], params["b1"]))
    h2 = lrelu(lin(h1, params["w2"], params["b2"]))
    out = lin(h2, params["w3"], params["b3"])
    probs = jax.nn.softmax(out, axis=1)
    log_probs = jax.nn.log_softmax(out, axis=1)
    reg = jnp.mean(out ** 2)
    ent = -jnp.mean(jnp.sum(probs * log_probs, axis=1))
    return probs, reg, ent


if __name__ == "__main__":
    key = jax.random.PRNGKey(0)
    k_obs, k_par, k_samp = jax.random.split(key, 3)

    B, INPUT_DIM, HIDDEN_DIM, OUT_DIM = 8, 16, 32, 5
    obs = jax.random.normal(k_obs, (B, INPUT_DIM), dtype=jnp.float32)
    params = init_params(k_par, INPUT_DIM, OUT_DIM, HIDDEN_DIM)
    prep = prepare_params(params)   # one-time; not on the per-call path

    act, int_act, probs, log_pi, reg, ent = discrete_policy_forward(
        obs, prep, k_samp, out_dim=OUT_DIM)
    jax.block_until_ready((act, int_act, probs, log_pi, reg, ent))

    # structural sanity checks
    assert act.shape == (B, OUT_DIM) and probs.shape == (B, OUT_DIM)
    assert int_act.shape == (B, 1) and log_pi.shape == (B, 1)
    assert bool(jnp.all(jnp.abs(jnp.sum(probs, axis=1) - 1.0) < 1e-2))
    assert bool(jnp.all(jnp.sum(act, axis=1) == 1.0))
    assert bool(jnp.all((int_act >= 0) & (int_act < OUT_DIM)))
    assert bool(jnp.isfinite(reg)) and bool(jnp.isfinite(ent))
    assert bool(jnp.all(log_pi <= 0.0))

    # loose numerical cross-check vs a pure-JAX reference
    probs_ref, reg_ref, ent_ref = _reference(obs, params)
    assert bool(jnp.allclose(probs, probs_ref, atol=2e-2))
    assert bool(jnp.allclose(reg, reg_ref, rtol=1e-1, atol=1e-2))
    assert bool(jnp.allclose(ent, ent_ref, rtol=1e-1, atol=1e-2))

    print("KERNEL_OK")
</pallas_src>

<mosaic_0001>
module attributes {stable_mosaic.version = 11 : i64} {
  func.func @discrete_policy_kernel(%arg0: memref<8x128xf32, #tpu.memory_space<vmem>>, %arg1: memref<128x128xf32, #tpu.memory_space<vmem>>, %arg2: memref<1x128xf32, #tpu.memory_space<vmem>>, %arg3: memref<128x128xf32, #tpu.memory_space<vmem>>, %arg4: memref<1x128xf32, #tpu.memory_space<vmem>>, %arg5: memref<128x128xf32, #tpu.memory_space<vmem>>, %arg6: memref<1x128xf32, #tpu.memory_space<vmem>>, %arg7: memref<8x128xf32, #tpu.memory_space<vmem>>, %arg8: memref<8x384xf32, #tpu.memory_space<vmem>>) attributes {dimension_semantics = [], scalar_prefetch = 0 : i64, scratch_operands = 0 : i64, tpu.core_type = #tpu.core_type<tc>} {
    %c0 = arith.constant 0 : index
    %c0_0 = arith.constant 0 : index
    %0 = vector.load %arg0[%c0, %c0_0] : memref<8x128xf32, #tpu.memory_space<vmem>>, vector<8x128xf32>
    %c0_1 = arith.constant 0 : index
    %c0_2 = arith.constant 0 : index
    %1 = vector.load %arg1[%c0_1, %c0_2] : memref<128x128xf32, #tpu.memory_space<vmem>>, vector<128x128xf32>
    %cst = arith.constant dense<0.000000e+00> : vector<8x128xf32>
    %2 = tpu.matmul %0, %1, %cst {dimension_numbers = #tpu.dot_dimension_numbers<[1], [0], [0], [1], [0, 0, 1, 1], [], []>} : vector<8x128xf32>, vector<128x128xf32>, vector<8x128xf32> -> vector<8x128xf32>
    %c0_3 = arith.constant 0 : index
    %c0_4 = arith.constant 0 : index
    %3 = vector.load %arg2[%c0_3, %c0_4] : memref<1x128xf32, #tpu.memory_space<vmem>>, vector<1x128xf32>
    %4 = vector.broadcast %3 : vector<1x128xf32> to vector<8x128xf32>
    %5 = arith.addf %2, %4 : vector<8x128xf32>
    %cst_5 = arith.constant 0.00999999977 : f32
    %6 = vector.broadcast %cst_5 : f32 to vector<8x128xf32>
    %7 = arith.mulf %6, %5 : vector<8x128xf32>
    %8 = arith.maximumf %5, %7 : vector<8x128xf32>
    %c0_6 = arith.constant 0 : index
    %c0_7 = arith.constant 0 : index
    %9 = vector.load %arg3[%c0_6, %c0_7] : memref<128x128xf32, #tpu.memory_space<vmem>>, vector<128x128xf32>
    %cst_8 = arith.constant dense<0.000000e+00> : vector<8x128xf32>
    %10 = tpu.matmul %8, %9, %cst_8 {dimension_numbers = #tpu.dot_dimension_numbers<[1], [0], [0], [1], [0, 0, 1, 1], [], []>} : vector<8x128xf32>, vector<128x128xf32>, vector<8x128xf32> -> vector<8x128xf32>
    %c0_9 = arith.constant 0 : index
    %c0_10 = arith.constant 0 : index
    %11 = vector.load %arg4[%c0_9, %c0_10] : memref<1x128xf32, #tpu.memory_space<vmem>>, vector<1x128xf32>
    %12 = vector.broadcast %11 : vector<1x128xf32> to vector<8x128xf32>
    %13 = arith.addf %10, %12 : vector<8x128xf32>
    %cst_11 = arith.constant 0.00999999977 : f32
    %14 = vector.broadcast %cst_11 : f32 to vector<8x128xf32>
    %15 = arith.mulf %14, %13 : vector<8x128xf32>
    %16 = arith.maximumf %13, %15 : vector<8x128xf32>
    %c0_12 = arith.constant 0 : index
    %c0_13 = arith.constant 0 : index
    %17 = vector.load %arg5[%c0_12, %c0_13] : memref<128x128xf32, #tpu.memory_space<vmem>>, vector<128x128xf32>
    %cst_14 = arith.constant dense<0.000000e+00> : vector<8x128xf32>
    %18 = tpu.matmul %16, %17, %cst_14 {dimension_numbers = #tpu.dot_dimension_numbers<[1], [0], [0], [1], [0, 0, 1, 1], [], []>} : vector<8x128xf32>, vector<128x128xf32>, vector<8x128xf32> -> vector<8x128xf32>
    %c0_15 = arith.constant 0 : index
    %c0_16 = arith.constant 0 : index
    %19 = vector.load %arg6[%c0_15, %c0_16] : memref<1x128xf32, #tpu.memory_space<vmem>>, vector<1x128xf32>
    %20 = vector.broadcast %19 : vector<1x128xf32> to vector<8x128xf32>
    %21 = arith.addf %18, %20 : vector<8x128xf32>
    %22 = tpu.iota {dimensions = array<i32: 1>} : vector<8x128xi32>
    %c5_i32 = arith.constant 5 : i32
    %23 = vector.broadcast %c5_i32 : i32 to vector<8x128xi32>
    %24 = arith.cmpi slt, %22, %23 : vector<8x128xi32>
    %cst_17 = arith.constant -1.000000e+30 : f32
    %25 = vector.broadcast %cst_17 : f32 to vector<8x128xf32>
    %26 = arith.select %24, %21, %25 : vector<8x128xi1>, vector<8x128xf32>
    %cst_18 = arith.constant dense<0xFF800000> : vector<8xf32>
    %27 = vector.multi_reduction <maximumf>, %26, %cst_18 [1] : vector<8x128xf32> to vector<8xf32>
    %28 = vector.shape_cast %27 : vector<8xf32> to vector<8x1xf32>
    %29 = vector.broadcast %28 : vector<8x1xf32> to vector<8x128xf32>
    %30 = arith.subf %26, %29 : vector<8x128xf32>
    %31 = math.exp %30 : vector<8x128xf32>
    %cst_19 = arith.constant dense<0.000000e+00> : vector<8xf32>
    %32 = vector.multi_reduction <add>, %31, %cst_19 [1] : vector<8x128xf32> to vector<8xf32>
    %33 = vector.shape_cast %32 : vector<8xf32> to vector<8x1xf32>
    %cst_20 = arith.constant 1.000000e+00 : f32
    %34 = vector.broadcast %cst_20 : f32 to vector<8x1xf32>
    %35 = arith.divf %34, %33 : vector<8x1xf32>
    %36 = vector.broadcast %35 : vector<8x1xf32> to vector<8x128xf32>
    %37 = arith.mulf %31, %36 : vector<8x128xf32>
    %38 = vector.broadcast %28 : vector<8x1xf32> to vector<8x128xf32>
    %39 = arith.subf %26, %38 : vector<8x128xf32>
    %40 = math.log %33 : vector<8x1xf32>
    %41 = vector.broadcast %40 : vector<8x1xf32> to vector<8x128xf32>
    %42 = arith.subf %39, %41 : vector<8x128xf32>
    %c0_21 = arith.constant 0 : index
    %c0_22 = arith.constant 0 : index
    %43 = vector.load %arg7[%c0_21, %c0_22] : memref<8x128xf32, #tpu.memory_space<vmem>>, vector<8x128xf32>
    %44 = arith.addf %42, %43 : vector<8x128xf32>
    %cst_23 = arith.constant dense<0xFF800000> : vector<8xf32>
    %45 = vector.multi_reduction <maximumf>, %44, %cst_23 [1] : vector<8x128xf32> to vector<8xf32>
    %46 = vector.shape_cast %45 : vector<8xf32> to vector<8x1xf32>
    %47 = vector.broadcast %46 : vector<8x1xf32> to vector<8x128xf32>
    %48 = arith.cmpf oge, %44, %47 : vector<8x128xf32>
    %c128_i32 = arith.constant 128 : i32
    %49 = vector.broadcast %c128_i32 : i32 to vector<8x128xi32>
    %50 = arith.select %48, %22, %49 : vector<8x128xi1>, vector<8x128xi32>
    %cst_24 = arith.constant dense<2147483647> : vector<8xi32>
    %51 = vector.multi_reduction <minsi>, %50, %cst_24 [1] : vector<8x128xi32> to vector<8xi32>
    %52 = vector.shape_cast %51 : vector<8xi32> to vector<8x1xi32>
    %53 = vector.broadcast %52 : vector<8x1xi32> to vector<8x128xi32>
    %54 = arith.cmpi eq, %22, %53 : vector<8x128xi32>
    %55 = arith.extui %54 : vector<8x128xi1> to vector<8x128xi32>
    %56 = arith.sitofp %55 : vector<8x128xi32> to vector<8x128xf32>
    %57 = arith.mulf %56, %42 : vector<8x128xf32>
    %cst_25 = arith.constant dense<0.000000e+00> : vector<8xf32>
    %58 = vector.multi_reduction <add>, %57, %cst_25 [1] : vector<8x128xf32> to vector<8xf32>
    %59 = vector.shape_cast %58 : vector<8xf32> to vector<8x1xf32>
    %60 = arith.mulf %21, %21 : vector<8x128xf32>
    %cst_26 = arith.constant dense<0.000000e+00> : vector<8xf32>
    %61 = vector.multi_reduction <add>, %60, %cst_26 [1] : vector<8x128xf32> to vector<8xf32>
    %62 = vector.shape_cast %61 : vector<8xf32> to vector<8x1xf32>
    %cst_27 = arith.constant dense<0.000000e+00> : vector<1xf32>
    %63 = vector.multi_reduction <add>, %62, %cst_27 [0] : vector<8x1xf32> to vector<1xf32>
    %64 = vector.shape_cast %63 : vector<1xf32> to vector<1x1xf32>
    %cst_28 = arith.constant 2.500000e-02 : f32
    %65 = vector.broadcast %cst_28 : f32 to vector<1x1xf32>
    %66 = arith.mulf %64, %65 : vector<1x1xf32>
    %67 = arith.mulf %37, %42 : vector<8x128xf32>
    %cst_29 = arith.constant dense<0.000000e+00> : vector<8xf32>
    %68 = vector.multi_reduction <add>, %67, %cst_29 [1] : vector<8x128xf32> to vector<8xf32>
    %69 = vector.shape_cast %68 : vector<8xf32> to vector<8x1xf32>
    %cst_30 = arith.constant dense<0.000000e+00> : vector<1xf32>
    %70 = vector.multi_reduction <add>, %69, %cst_30 [0] : vector<8x1xf32> to vector<1xf32>
    %71 = vector.shape_cast %70 : vector<1xf32> to vector<1x1xf32>
    %cst_31 = arith.constant 0.000000e+00 : f32
    %72 = vector.broadcast %cst_31 : f32 to vector<1x1xf32>
    %73 = arith.subf %72, %71 : vector<1x1xf32>
    %cst_32 = arith.constant 1.250000e-01 : f32
    %74 = vector.broadcast %cst_32 : f32 to vector<1x1xf32>
    %75 = arith.mulf %73, %74 : vector<1x1xf32>
    %c0_i32 = arith.constant 0 : i32
    %76 = vector.broadcast %c0_i32 : i32 to vector<8x128xi32>
    %77 = arith.cmpi eq, %22, %76 : vector<8x128xi32>
    %cst_33 = arith.constant 0.000000e+00 : f32
    %78 = vector.shape_cast %59 : vector<8x1xf32> to vector<8x1xf32>
    %79 = vector.broadcast %78 : vector<8x1xf32> to vector<8x128xf32>
    %80 = vector.broadcast %cst_33 : f32 to vector<8x128xf32>
    %81 = arith.select %77, %79, %80 : vector<8x128xi1>, vector<8x128xf32>
    %c1_i32 = arith.constant 1 : i32
    %82 = vector.broadcast %c1_i32 : i32 to vector<8x128xi32>
    %83 = arith.cmpi eq, %22, %82 : vector<8x128xi32>
    %84 = arith.sitofp %52 : vector<8x1xi32> to vector<8x1xf32>
    %85 = vector.shape_cast %84 : vector<8x1xf32> to vector<8x1xf32>
    %86 = vector.broadcast %85 : vector<8x1xf32> to vector<8x128xf32>
    %87 = arith.select %83, %86, %81 : vector<8x128xi1>, vector<8x128xf32>
    %c2_i32 = arith.constant 2 : i32
    %88 = vector.broadcast %c2_i32 : i32 to vector<8x128xi32>
    %89 = arith.cmpi eq, %22, %88 : vector<8x128xi32>
    %90 = vector.shape_cast %66 : vector<1x1xf32> to vector<1x1xf32>
    %91 = vector.broadcast %90 : vector<1x1xf32> to vector<8x128xf32>
    %92 = arith.select %89, %91, %87 : vector<8x128xi1>, vector<8x128xf32>
    %c3_i32 = arith.constant 3 : i32
    %93 = vector.broadcast %c3_i32 : i32 to vector<8x128xi32>
    %94 = arith.cmpi eq, %22, %93 : vector<8x128xi32>
    %95 = vector.shape_cast %75 : vector<1x1xf32> to vector<1x1xf32>
    %96 = vector.broadcast %95 : vector<1x1xf32> to vector<8x128xf32>
    %97 = arith.select %94, %96, %92 : vector<8x128xi1>, vector<8x128xf32>
    %c0_34 = arith.constant 0 : index
    %c0_35 = arith.constant 0 : index
    %98 = vector.load %arg8[%c0_34, %c0_35] : memref<8x384xf32, #tpu.memory_space<vmem>>, vector<8x128xf32>
    tpu.vector_store %arg8[%c0_34, %c0_35], %56 {strides = array<i32>} : memref<8x384xf32, #tpu.memory_space<vmem>>, vector<8x128xf32>,
    %c0_36 = arith.constant 0 : index
    %c128 = arith.constant 128 : index
    %99 = vector.load %arg8[%c0_36, %c128] : memref<8x384xf32, #tpu.memory_space<vmem>>, vector<8x128xf32>
    tpu.vector_store %arg8[%c0_36, %c128], %37 {strides = array<i32>} : memref<8x384xf32, #tpu.memory_space<vmem>>, vector<8x128xf32>,
    %c0_37 = arith.constant 0 : index
    %c256 = arith.constant 256 : index
    %100 = vector.load %arg8[%c0_37, %c256] : memref<8x384xf32, #tpu.memory_space<vmem>>, vector<8x128xf32>
    tpu.vector_store %arg8[%c0_37, %c256], %97 {strides = array<i32>} : memref<8x384xf32, #tpu.memory_space<vmem>>, vector<8x128xf32>,
    return
  }
}

</mosaic_0001>

<llo_original>
// kernel: discrete_policy_forward.1
$region0: #{discrete_policy_forward.1}
  #allocation0 [shape = 'u32[]', space=smem, size = 0x4, offset = 0x4, fixed_abs, tag = 'smem constant byte address 0x4 - core index']
  #allocation1 [shape = 'u32[144,128]{1,0:T(1,128)}', space=vmem, size = 0x12000, scoped, tag = 'internal scratch']
  %s0 = inlined_call_operand.vmem [shape: f32[8,128], index: 0, kind: input, shape index: {}]
  %s1 = inlined_call_operand.hbm [shape: f32[128,128], index: 1, kind: input, shape index: {}]
  %s2 = inlined_call_operand.vmem [shape: f32[1,128], index: 2, kind: input, shape index: {}]
  %s3 = inlined_call_operand.hbm [shape: f32[128,128], index: 3, kind: input, shape index: {}]
  %s4 = inlined_call_operand.vmem [shape: f32[1,128], index: 4, kind: input, shape index: {}]
  %s5 = inlined_call_operand.hbm [shape: f32[128,128], index: 5, kind: input, shape index: {}]
  %s6 = inlined_call_operand.vmem [shape: f32[1,128], index: 6, kind: input, shape index: {}]
  %s7 = inlined_call_operand.vmem [shape: f32[8,128], index: 7, kind: input, shape index: {}]
  %s8 = inlined_call_operand.vmem [shape: f32[8,384], index: 8, kind: output, shape index: {}]
  %s9 = sld [smem:[#allocation0]]
  $region54: #{discrete_policy_forward.1} parent=0
    _
  %s11 = ssub.s32 1, %s9
  %s12 = scalar_select 0, %s11, %s9
  $region1: #{discrete_policy_forward.1} parent=0
    #allocation2 [shape = 'u8[65536]{0}', space=vmem, size = 0x10000, scoped, tag = 'input window, operand 1, single buffered']
    #allocation3 [shape = 's32[1]{0}', space=sflag, size = 0x4, scoped, tag = 'scoped memory for discrete_policy_forward.1']
    #allocation4 [shape = 'u8[65536]{0}', space=vmem, size = 0x10000, scoped, tag = 'input window, operand 3, single buffered']
    #allocation5 [shape = 's32[1]{0}', space=sflag, size = 0x4, scoped, tag = 'scoped memory for discrete_policy_forward.1']
    #allocation6 [shape = 'u8[65536]{0}', space=vmem, size = 0x10000, scoped, tag = 'input window, operand 5, single buffered']
    %13 = vsyncpa [#allocation3], 0
    %14 = vsyncpa [#allocation5], 0
    // Predicated region
    $region2: #{discrete_policy_forward.1} parent=1 // pred_check
      _
    $region3: #{discrete_policy_forward.1} parent=1 // pred_check_branch
      %16 = sbr.rel (0) target = $region5
    $region4: #{discrete_policy_forward.1} parent=1 // pred_region
      _
    $region5: #{discrete_policy_forward.1} parent=1 // pred_fallthru
      _
    // Predicated region
    $region6: #{discrete_policy_forward.1} parent=1 // pred_check
      _
    $region7: #{discrete_policy_forward.1} parent=1 // pred_check_branch
      %18 = sbr.rel (0) target = $region9
    $region8: #{discrete_policy_forward.1} parent=1 // pred_region
      %s20 = ssub.s32 2048, 2048
      %21 = vsyncadd [#allocation3], %s20
      %s22 = sshll.u32 [#allocation2], 4
      %s23 = int_to_ptr.vmem [resolvable:$true] %s22
      %28 = dma.hbm_to_vmem [thread:$0]  %s1, 2048, %s23, [#allocation3], 128, 128, 8
    $region9: #{discrete_policy_forward.1} parent=1 // pred_fallthru
      _
    // Predicated region
    $region10: #{discrete_policy_forward.1} parent=1 // pred_check
      _
    $region11: #{discrete_policy_forward.1} parent=1 // pred_check_branch
      %30 = sbr.rel (0) target = $region13
    $region12: #{discrete_policy_forward.1} parent=1 // pred_region
      _
    $region13: #{discrete_policy_forward.1} parent=1 // pred_fallthru
      _
    // Predicated region
    $region14: #{discrete_policy_forward.1} parent=1 // pred_check
      _
    $region15: #{discrete_policy_forward.1} parent=1 // pred_check_branch
      %32 = sbr.rel (0) target = $region17
    $region16: #{discrete_policy_forward.1} parent=1 // pred_region
      %s34 = ssub.s32 2048, 2048
      %35 = vsyncadd [#allocation5], %s34
      %s36 = sshll.u32 [#allocation4], 4
      %s37 = int_to_ptr.vmem [resolvable:$true] %s36
      %42 = dma.hbm_to_vmem [thread:$0]  %s3, 2048, %s37, [#allocation5], 128, 128, 8
    $region17: #{discrete_policy_forward.1} parent=1 // pred_fallthru
      _
    // Predicated region
    $region18: #{discrete_policy_forward.1} parent=1 // pred_check
      _
    $region19: #{discrete_policy_forward.1} parent=1 // pred_check_branch
      %44 = sbr.rel (0) target = $region21
    $region20: #{discrete_policy_forward.1} parent=1 // pred_region
      _
    $region21: #{discrete_policy_forward.1} parent=1 // pred_fallthru
      _
    // Predicated region
    $region22: #{discrete_policy_forward.1} parent=1 // pred_check
      _
    $region23: #{discrete_policy_forward.1} parent=1 // pred_check_branch
      %46 = sbr.rel (0) target = $region25
    $region24: #{discrete_policy_forward.1} parent=1 // pred_region
      %s48 = ssub.s32 2048, 2048
      %49 = vsyncadd [#allocation5], %s48
      %s50 = sshll.u32 [#allocation6], 4
      %s51 = int_to_ptr.vmem [resolvable:$true] %s50
      %56 = dma.hbm_to_vmem [thread:$0]  %s5, 2048, %s51, [#allocation5], 128, 128, 8
    $region25: #{discrete_policy_forward.1} parent=1 // pred_fallthru
      _
    // Predicated region
    $region26: #{discrete_policy_forward.1} parent=1 // pred_check
      _
    $region27: #{discrete_policy_forward.1} parent=1 // pred_check_branch
      %58 = sbr.rel (0) target = $region29
    $region28: #{discrete_policy_forward.1} parent=1 // pred_region
      _
    $region29: #{discrete_policy_forward.1} parent=1 // pred_fallthru
      _
    // Predicated region
    $region30: #{discrete_policy_forward.1} parent=1 // pred_check
      _
    $region31: #{discrete_policy_forward.1} parent=1 // pred_check_branch
      %60 = sbr.rel (0) target = $region33
    $region32: #{discrete_policy_forward.1} parent=1 // pred_region
      _
    $region33: #{discrete_policy_forward.1} parent=1 // pred_fallthru
      _
    // Predicated region
    $region34: #{discrete_policy_forward.1} parent=1 // pred_check
      _
    $region35: #{discrete_policy_forward.1} parent=1 // pred_check_branch
      %62 = sbr.rel (0) target = $region37
    $region36: #{discrete_policy_forward.1} parent=1 // pred_region
      %63 = dma.done [#allocation3], 2048
    $region37: #{discrete_policy_forward.1} parent=1 // pred_fallthru
      _
    // Predicated region
    $region38: #{discrete_policy_forward.1} parent=1 // pred_check
      _
    $region39: #{discrete_policy_forward.1} parent=1 // pred_check_branch
      %65 = sbr.rel (0) target = $region41
    $region40: #{discrete_policy_forward.1} parent=1 // pred_region
      %66 = dma.done [#allocation5], 2048
    $region41: #{discrete_policy_forward.1} parent=1 // pred_fallthru
      _
    // Predicated region
    $region42: #{discrete_policy_forward.1} parent=1 // pred_check
      _
    $region43: #{discrete_policy_forward.1} parent=1 // pred_check_branch
      %68 = sbr.rel (0) target = $region45
    $region44: #{discrete_policy_forward.1} parent=1 // pred_region
      %69 = dma.done [#allocation5], 2048
    $region45: #{discrete_policy_forward.1} parent=1 // pred_fallthru
      _
    %v70 = vld [vmem:[%s0] sm:$0xff]
    %v71 = vld [vmem:[#allocation2] sm:$0xff]
    %v72 = vld [vmem:[#allocation2 + $0x8] sm:$0xff]
    %v73 = vld [vmem:[#allocation2 + $0x10] sm:$0xff]
    %v74 = vld [vmem:[#allocation2 + $0x18] sm:$0xff]
    %v75 = vld [vmem:[#allocation2 + $0x20] sm:$0xff]
    %v76 = vld [vmem:[#allocation2 + $0x28] sm:$0xff]
    %v77 = vld [vmem:[#allocation2 + $0x30] sm:$0xff]
    %v78 = vld [vmem:[#allocation2 + $0x38] sm:$0xff]
    %v79 = vld [vmem:[#allocation2 + $0x40] sm:$0xff]
    %v80 = vld [vmem:[#allocation2 + $0x48] sm:$0xff]
    %v81 = vld [vmem:[#allocation2 + $0x50] sm:$0xff]
    %v82 = vld [vmem:[#allocation2 + $0x58] sm:$0xff]
    %v83 = vld [vmem:[#allocation2 + $0x60] sm:$0xff]
    %v84 = vld [vmem:[#allocation2 + $0x68] sm:$0xff]
    %v85 = vld [vmem:[#allocation2 + $0x70] sm:$0xff]
    %v86 = vld [vmem:[#allocation2 + $0x78] sm:$0xff]
    %v87 = vld [vmem:[%s2] sm:$0x1]
    %v89 = vlaneseq
    %v90 = vshrl.u32 %v89, 7
    %v91 = vsub.s32 0, %v90
    %v92 = vrot.slane %v87, %v91
    %94 = vmatprep.subr.mxu0 0.0
    %95 = vmatpush1.msra.mxu0 %v71
    %96 = vmatprep.subr.mxu0 0.0
    %97 = vmatpush1.msra.mxu0 %v72
    %98 = vmatprep.subr.mxu0 0.0
    %99 = vmatpush1.msra.mxu0 %v73
    %100 = vmatprep.subr.mxu0 0.0
    %101 = vmatpush1.msra.mxu0 %v74
    %102 = vmatprep.subr.mxu0 0.0
    %103 = vmatpush1.msra.mxu0 %v75
    %104 = vmatprep.subr.mxu0 0.0
    %105 = vmatpush1.msra.mxu0 %v76
    %106 = vmatprep.subr.mxu0 0.0
    %107 = vmatpush1.msra.mxu0 %v77
    %108 = vmatprep.subr.mxu0 0.0
    %109 = vmatpush1.msra.mxu0 %v78
    %110 = vmatprep.subr.mxu0 0.0
    %111 = vmatpush1.msra.mxu0 %v79
    %112 = vmatprep.subr.mxu0 0.0
    %113 = vmatpush1.msra.mxu0 %v80
    %114 = vmatprep.subr.mxu0 0.0
    %115 = vmatpush1.msra.mxu0 %v81
    %116 = vmatprep.subr.mxu0 0.0
    %117 = vmatpush1.msra.mxu0 %v82
    %118 = vmatprep.subr.mxu0 0.0
    %119 = vmatpush1.msra.mxu0 %v83
    %120 = vmatprep.subr.mxu0 0.0
    %121 = vmatpush1.msra.mxu0 %v84
    %122 = vmatprep.subr.mxu0 0.0
    %123 = vmatpush1.msra.mxu0 %v85
    %124 = vmatprep.subr.mxu0 0.0
    %125 = vmatpush1.msra.mxu0 %v86
    %126 = vmatprep.subr.mxu0 0.0
    %127 = vmatpush1.msra.mxu0 0.0
    %128 = vmatprep.subr.mxu0 0.0
    %129 = vmatpush1.msra.mxu0 0.0
    %130 = vmatprep.subr.mxu0 0.0
    %131 = vmatpush1.msra.mxu0 0.0
    %132 = vmatprep.subr.mxu0 0.0
    %133 = vmatpush1.msra.mxu0 0.0
    %134 = vmatprep.subr.mxu0 0.0
    %135 = vmatpush1.msra.mxu0 0.0
    %136 = vmatprep.subr.mxu0 0.0
    %137 = vmatpush1.msra.mxu0 0.0
    %138 = vmatprep.subr.mxu0 0.0
    %139 = vmatpush1.msra.mxu0 0.0
    %140 = vmatprep.subr.mxu0 0.0
    %141 = vmatpush1.msra.mxu0 0.0
    %142 = vmatprep.subr.mxu0 0.0
    %143 = vmatpush1.msra.mxu0 0.0
    %144 = vmatprep.subr.mxu0 0.0
    %145 = vmatpush1.msra.mxu0 0.0
    %146 = vmatprep.subr.mxu0 0.0
    %147 = vmatpush1.msra.mxu0 0.0
    %148 = vmatprep.subr.mxu0 0.0
    %149 = vmatpush1.msra.mxu0 0.0
    %150 = vmatprep.subr.mxu0 0.0
    %151 = vmatpush1.msra.mxu0 0.0
    %152 = vmatprep.subr.mxu0 0.0
    %153 = vmatpush1.msra.mxu0 0.0
    %154 = vmatprep.subr.mxu0 0.0
    %155 = vmatpush1.msra.mxu0 0.0
    %156 = vmatprep.subr.mxu0 0.0
    %157 = vmatpush1.msra.mxu0 0.0
    %158 = vmatprep.mubr.f32.mxu0 0.0
    %159 = vmatmul.mubr.f32.gmra.mrb[0].mxu0 %v70
    %v160 = vpop.f32.mrb[0].mxu0
    %v161 = vadd.f32 %v92, %v160
    %v162 = vpop.f32.mrb[0].mxu0
    %163 = vdwg.mxu0
    %v164 = vmul.f32 %v161, 0.01
    %v165 = vmax.f32 %v161, %v164
    %v166 = vld [vmem:[#allocation4] sm:$0xff]
    %v167 = vld [vmem:[#allocation4 + $0x8] sm:$0xff]
    %v168 = vld [vmem:[#allocation4 + $0x10] sm:$0xff]
    %v169 = vld [vmem:[#allocation4 + $0x18] sm:$0xff]
    %v170 = vld [vmem:[#allocation4 + $0x20] sm:$0xff]
    %v171 = vld [vmem:[#allocation4 + $0x28] sm:$0xff]
    %v172 = vld [vmem:[#allocation4 + $0x30] sm:$0xff]
    %v173 = vld [vmem:[#allocation4 + $0x38] sm:$0xff]
    %v174 = vld [vmem:[#allocation4 + $0x40] sm:$0xff]
    %v175 = vld [vmem:[#allocation4 + $0x48] sm:$0xff]
    %v176 = vld [vmem:[#allocation4 + $0x50] sm:$0xff]
    %v177 = vld [vmem:[#allocation4 + $0x58] sm:$0xff]
    %v178 = vld [vmem:[#allocation4 + $0x60] sm:$0xff]
    %v179 = vld [vmem:[#allocation4 + $0x68] sm:$0xff]
    %v180 = vld [vmem:[#allocation4 + $0x70] sm:$0xff]
    %v181 = vld [vmem:[#allocation4 + $0x78] sm:$0xff]
    %v182 = vld [vmem:[%s4] sm:$0x1]
    %v184 = vlaneseq
    %v185 = vshrl.u32 %v184, 7
    %v186 = vsub.s32 0, %v185
    %v187 = vrot.slane %v182, %v186
    %189 = vmatprep.subr.mxu0 0.0
    %190 = vmatpush1.msra.mxu0 %v166
    %191 = vmatprep.subr.mxu0 0.0
    %192 = vmatpush1.msra.mxu0 %v167
    %193 = vmatprep.subr.mxu0 0.0
    %194 = vmatpush1.msra.mxu0 %v168
    %195 = vmatprep.subr.mxu0 0.0
    %196 = vmatpush1.msra.mxu0 %v169
    %197 = vmatprep.subr.mxu0 0.0
    %198 = vmatpush1.msra.mxu0 %v170
    %199 = vmatprep.subr.mxu0 0.0
    %200 = vmatpush1.msra.mxu0 %v171
    %201 = vmatprep.subr.mxu0 0.0
    %202 = vmatpush1.msra.mxu0 %v172
    %203 = vmatprep.subr.mxu0 0.0
    %204 = vmatpush1.msra.mxu0 %v173
    %205 = vmatprep.subr.mxu0 0.0
    %206 = vmatpush1.msra.mxu0 %v174
    %207 = vmatprep.subr.mxu0 0.0
    %208 = vmatpush1.msra.mxu0 %v175
    %209 = vmatprep.subr.mxu0 0.0
    %210 = vmatpush1.msra.mxu0 %v176
    %211 = vmatprep.subr.mxu0 0.0
    %212 = vmatpush1.msra.mxu0 %v177
    %213 = vmatprep.subr.mxu0 0.0
    %214 = vmatpush1.msra.mxu0 %v178
    %215 = vmatprep.subr.mxu0 0.0
    %216 = vmatpush1.msra.mxu0 %v179
    %217 = vmatprep.subr.mxu0 0.0
    %218 = vmatpush1.msra.mxu0 %v180
    %219 = vmatprep.subr.mxu0 0.0
    %220 = vmatpush1.msra.mxu0 %v181
    %221 = vmatprep.subr.mxu0 0.0
    %222 = vmatpush1.msra.mxu0 0.0
    %223 = vmatprep.subr.mxu0 0.0
    %224 = vmatpush1.msra.mxu0 0.0
    %225 = vmatprep.subr.mxu0 0.0
    %226 = vmatpush1.msra.mxu0 0.0
    %227 = vmatprep.subr.mxu0 0.0
    %228 = vmatpush1.msra.mxu0 0.0
    %229 = vmatprep.subr.mxu0 0.0
    %230 = vmatpush1.msra.mxu0 0.0
    %231 = vmatprep.subr.mxu0 0.0
    %232 = vmatpush1.msra.mxu0 0.0
    %233 = vmatprep.subr.mxu0 0.0
    %234 = vmatpush1.msra.mxu0 0.0
    %235 = vmatprep.subr.mxu0 0.0
    %236 = vmatpush1.msra.mxu0 0.0
    %237 = vmatprep.subr.mxu0 0.0
    %238 = vmatpush1.msra.mxu0 0.0
    %239 = vmatprep.subr.mxu0 0.0
    %240 = vmatpush1.msra.mxu0 0.0
    %241 = vmatprep.subr.mxu0 0.0
    %242 = vmatpush1.msra.mxu0 0.0
    %243 = vmatprep.subr.mxu0 0.0
    %244 = vmatpush1.msra.mxu0 0.0
    %245 = vmatprep.subr.mxu0 0.0
    %246 = vmatpush1.msra.mxu0 0.0
    %247 = vmatprep.subr.mxu0 0.0
    %248 = vmatpush1.msra.mxu0 0.0
    %249 = vmatprep.subr.mxu0 0.0
    %250 = vmatpush1.msra.mxu0 0.0
    %251 = vmatprep.subr.mxu0 0.0
    %252 = vmatpush1.msra.mxu0 0.0
    %253 = vmatprep.mubr.f32.mxu0 0.0
    %254 = vmatmul.mubr.f32.gmra.mrb[0].mxu0 %v165
    %v255 = vpop.f32.mrb[0].mxu0
    %v256 = vadd.f32 %v187, %v255
    %v257 = vpop.f32.mrb[0].mxu0
    %258 = vdwg.mxu0
    %v259 = vmul.f32 %v256, 0.01
    %v260 = vmax.f32 %v256, %v259
    %v261 = vld [vmem:[#allocation6] sm:$0xff]
    %v262 = vld [vmem:[#allocation6 + $0x8] sm:$0xff]
    %v263 = vld [vmem:[#allocation6 + $0x10] sm:$0xff]
    %v264 = vld [vmem:[#allocation6 + $0x18] sm:$0xff]
    %v265 = vld [vmem:[#allocation6 + $0x20] sm:$0xff]
    %v266 = vld [vmem:[#allocation6 + $0x28] sm:$0xff]
    %v267 = vld [vmem:[#allocation6 + $0x30] sm:$0xff]
    %v268 = vld [vmem:[#allocation6 + $0x38] sm:$0xff]
    %v269 = vld [vmem:[#allocation6 + $0x40] sm:$0xff]
    %v270 = vld [vmem:[#allocation6 + $0x48] sm:$0xff]
    %v271 = vld [vmem:[#allocation6 + $0x50] sm:$0xff]
    %v272 = vld [vmem:[#allocation6 + $0x58] sm:$0xff]
    %v273 = vld [vmem:[#allocation6 + $0x60] sm:$0xff]
    %v274 = vld [vmem:[#allocation6 + $0x68] sm:$0xff]
    %v275 = vld [vmem:[#allocation6 + $0x70] sm:$0xff]
    %v276 = vld [vmem:[#allocation6 + $0x78] sm:$0xff]
    %v277 = vld [vmem:[%s6] sm:$0x1]
    %v279 = vlaneseq
    %v280 = vshrl.u32 %v279, 7
    %v281 = vsub.s32 0, %v280
    %v282 = vrot.slane %v277, %v281
    %284 = vmatprep.subr.mxu0 0.0
    %285 = vmatpush1.msra.mxu0 %v261
    %286 = vmatprep.subr.mxu0 0.0
    %287 = vmatpush1.msra.mxu0 %v262
    %288 = vmatprep.subr.mxu0 0.0
    %289 = vmatpush1.msra.mxu0 %v263
    %290 = vmatprep.subr.mxu0 0.0
    %291 = vmatpush1.msra.mxu0 %v264
    %292 = vmatprep.subr.mxu0 0.0
    %293 = vmatpush1.msra.mxu0 %v265
    %294 = vmatprep.subr.mxu0 0.0
    %295 = vmatpush1.msra.mxu0 %v266
    %296 = vmatprep.subr.mxu0 0.0
    %297 = vmatpush1.msra.mxu0 %v267
    %298 = vmatprep.subr.mxu0 0.0
    %299 = vmatpush1.msra.mxu0 %v268
    %300 = vmatprep.subr.mxu0 0.0
    %301 = vmatpush1.msra.mxu0 %v269
    %302 = vmatprep.subr.mxu0 0.0
    %303 = vmatpush1.msra.mxu0 %v270
    %304 = vmatprep.subr.mxu0 0.0
    %305 = vmatpush1.msra.mxu0 %v271
    %306 = vmatprep.subr.mxu0 0.0
    %307 = vmatpush1.msra.mxu0 %v272
    %308 = vmatprep.subr.mxu0 0.0
    %309 = vmatpush1.msra.mxu0 %v273
    %310 = vmatprep.subr.mxu0 0.0
    %311 = vmatpush1.msra.mxu0 %v274
    %312 = vmatprep.subr.mxu0 0.0
    %313 = vmatpush1.msra.mxu0 %v275
    %314 = vmatprep.subr.mxu0 0.0
    %315 = vmatpush1.msra.mxu0 %v276
    %316 = vmatprep.subr.mxu0 0.0
    %317 = vmatpush1.msra.mxu0 0.0
    %318 = vmatprep.subr.mxu0 0.0
    %319 = vmatpush1.msra.mxu0 0.0
    %320 = vmatprep.subr.mxu0 0.0
    %321 = vmatpush1.msra.mxu0 0.0
    %322 = vmatprep.subr.mxu0 0.0
    %323 = vmatpush1.msra.mxu0 0.0
    %324 = vmatprep.subr.mxu0 0.0
    %325 = vmatpush1.msra.mxu0 0.0
    %326 = vmatprep.subr.mxu0 0.0
    %327 = vmatpush1.msra.mxu0 0.0
    %328 = vmatprep.subr.mxu0 0.0
    %329 = vmatpush1.msra.mxu0 0.0
    %330 = vmatprep.subr.mxu0 0.0
    %331 = vmatpush1.msra.mxu0 0.0
    %332 = vmatprep.subr.mxu0 0.0
    %333 = vmatpush1.msra.mxu0 0.0
    %334 = vmatprep.subr.mxu0 0.0
    %335 = vmatpush1.msra.mxu0 0.0
    %336 = vmatprep.subr.mxu0 0.0
    %337 = vmatpush1.msra.mxu0 0.0
    %338 = vmatprep.subr.mxu0 0.0
    %339 = vmatpush1.msra.mxu0 0.0
    %340 = vmatprep.subr.mxu0 0.0
    %341 = vmatpush1.msra.mxu0 0.0
    %342 = vmatprep.subr.mxu0 0.0
    %343 = vmatpush1.msra.mxu0 0.0
    %344 = vmatprep.subr.mxu0 0.0
    %345 = vmatpush1.msra.mxu0 0.0
    %346 = vmatprep.subr.mxu0 0.0
    %347 = vmatpush1.msra.mxu0 0.0
    %348 = vmatprep.mubr.f32.mxu0 0.0
    %349 = vmatmul.mubr.f32.gmra.mrb[0].mxu0 %v260
    %v350 = vpop.f32.mrb[0].mxu0
    %v351 = vadd.f32 %v282, %v350
    %v352 = vpop.f32.mrb[0].mxu0
    %353 = vdwg.mxu0
    %v354 = vlaneseq
    %v355 = vand.u32 %v354, 127
    %vm356 = vcmp.lt.s32.totalorder %v355, 5
    %v357 = vsel %vm356, %v351, -1e+30
    %358 = vmax.xlane.f32.xlu0 %v357
    %v359 = vpop.xlane.xlu0 %358
    %v360 = vsub.f32 %v357, %v359
    %v361 = vmul.f32 %v360, 1.442695
    %v362 = vpow.pop %v361
    %363 = vadd.xlane.f32.xlu0 %v362
    %v364 = vpop.xlane.xlu0 %363
    %v365 = vrcp.pop %v364
    %v366 = vmul.f32 1.0, %v365
    %v367 = vmul.f32 %v362, %v366
    %v368 = vlog2.pop %v364
    %v369 = vmul.f32 %v368, 0.6931472
    %v370 = vsub.f32 %v360, %v369
    %v371 = vld [vmem:[%s7] sm:$0xff]
    %v372 = vadd.f32 %v370, %v371
    %373 = vmax.xlane.f32.xlu0 %v372
    %v374 = vpop.xlane.xlu0 %373
    %vm375 = vcmp.ge.f32.partialorder %v372, %v374
    %v376 = vsel %vm375, %v355, 128
    %v377 = vand.u32 %v376, 65535
    %v378 = vshra.s32 %v376, 16
    %v379 = vcvt.s32.f32 %v377
    %v380 = vcvt.s32.f32 %v378
    %381 = vmin.xlane.f32.xlu0 %v380
    %v382 = vpop.xlane.xlu0 %381
    %vm383 = vcmp.eq.f32.partialorder %v380, %v382
    %v384 = vsel %vm383, %v379, inf
    %385 = vmin.xlane.f32.xlu0 %v384
    %v386 = vpop.xlane.xlu0 %385
    %v387 = vcvt.f32.s32 %v386
    %v388 = vcvt.f32.s32 %v382
    %v389 = vshll.u32 %v388, 16
    %v390 = vadd.s32 %v389, %v387
    %vm391 = vcmp.eq.s32.totalorder %v355, %v390
    %v392 = vsel %vm391, 1, 0
    %v393 = vcvt.s32.f32 %v392
    %v394 = vmul.f32 %v393, %v370
    %395 = vadd.xlane.f32.xlu0 %v394
    %v396 = vpop.xlane.xlu0 %395
    %v397 = vmul.f32 %v351, %v351
    %398 = vadd.xlane.f32.xlu0 %v397
    %v399 = vpop.xlane.xlu0 %398
    %v400 = vrot.slane %v399, 4
    %v401 = vadd.f32 %v399, %v400
    %v402 = vrot.slane %v401, 2
    %v403 = vadd.f32 %v401, %v402
    %v404 = vrot.slane %v403, 1
    %v405 = vadd.f32 %v403, %v404
    %v406 = vmul.f32 %v405, 0.025
    %v407 = vmul.f32 %v367, %v370
    %408 = vadd.xlane.f32.xlu0 %v407
    %v409 = vpop.xlane.xlu0 %408
    %v410 = vrot.slane %v409, 4
    %v411 = vadd.f32 %v409, %v410
    %v412 = vrot.slane %v411, 2
    %v413 = vadd.f32 %v411, %v412
    %v414 = vrot.slane %v413, 1
    %v415 = vadd.f32 %v413, %v414
    %v416 = vsub.f32 0.0, %v415
    %v417 = vmul.f32 %v416, 0.125
    %vm418 = vcmp.eq.s32.totalorder %v355, 0
    %v419 = vsel %vm418, %v396, 0.0
    %vm420 = vcmp.eq.s32.totalorder %v355, 1
    %v421 = vcvt.s32.f32 %v390
    %v422 = vsel %vm420, %v421, %v419
    %vm423 = vcmp.eq.s32.totalorder %v355, 2
    %v424 = vsel %vm423, %v406, %v422
    %vm425 = vcmp.eq.s32.totalorder %v355, 3
    %v426 = vsel %vm425, %v417, %v424
    %427 = vst [vmem:[%s8] sm:$0xff] %v393
    %428 = vst [vmem:[%s8 + $0x8] sm:$0xff] %v367
    %429 = vst [vmem:[%s8 + $0x10] sm:$0xff] %v426
    // Predicated region
    $region46: #{discrete_policy_forward.1} parent=1 // pred_check
      _
    $region47: #{discrete_policy_forward.1} parent=1 // pred_check_branch
      %431 = sbr.rel (0) target = $region49
    $region48: #{discrete_policy_forward.1} parent=1 // pred_region
      _
    $region49: #{discrete_policy_forward.1} parent=1 // pred_fallthru
      _
    // Predicated region
    $region50: #{discrete_policy_forward.1} parent=1 // pred_check
      _
    $region51: #{discrete_policy_forward.1} parent=1 // pred_check_branch
      %433 = sbr.rel (0) target = $region53
    $region52: #{discrete_policy_forward.1} parent=1 // pred_region
      _
    $region53: #{discrete_policy_forward.1} parent=1 // pred_fallthru
      _
    %434 = vsyncpa [#allocation3], 1
    %435 = vsyncpa [#allocation5], 1

</llo_original>
